<compile_context>
chip_gen: v7x
topology: tpu7x:2x2x1
jax: 0.10.0
libtpu: 0.0.40
codegen_flags: <defaults>
</compile_context>

<pallas_src>
import math

import jax
import jax.numpy as jnp
from jax import lax
from jax.experimental import pallas as pl
from jax.experimental.pallas import tpu as pltpu

# ----------------------- small, module-consistent sizes -----------------------
B = 2                         # batch
IMG_C, IMG_HW = 3, 16         # backbone input   (orig: 3 x 224 x 224)
POOL_C, POOL_HW = 4, 4        # ROI pool input   (orig: 1024 x 14 x 14)
NUM_NODES, NODE_FEAT = 8, 128 # RGFM graph       (orig: 29 nodes x 100 feats; feat padded to lane width)
N_KG, KG_FEAT = 8, 128        # KG graph         (orig: ent_emb nodes x 100)
EMBED_DIM = 128               # fusion dim       (orig: 1024)
NUM_CLASSES = 29              # final fc         (same as module)
PADDED_CLASSES = 128          # lane-dense classifier output, sliced to 29 outside
LRELU_SLOPE = 0.2


# ======================= KG branch (parameter-only, precomputed) =======================

def _kg_branch_kernel(kg_inp_ref, w1_ref, w2_ref, adj_ref, o_ref):
    # KG_gc1 -> LeakyReLU -> KG_gc2   (GraphConvolution: adj @ (x @ W))
    s1 = jnp.dot(kg_inp_ref[...], w1_ref[...], preferred_element_type=jnp.float32)
    h = jnp.dot(adj_ref[...], s1, preferred_element_type=jnp.float32)
    h = jnp.where(h > 0, h, LRELU_SLOPE * h)
    s2 = jnp.dot(h, w2_ref[...], preferred_element_type=jnp.float32)
    o_ref[...] = jnp.dot(adj_ref[...], s2, preferred_element_type=jnp.float32)


def precompute_kg_x(kg_inp, w1, w2, adj):
    n, d = kg_inp.shape[0], w2.shape[1]
    return pl.pallas_call(
        _kg_branch_kernel,
        out_shape=jax.ShapeDtypeStruct((n, d), jnp.float32),
        in_specs=[pl.BlockSpec(memory_space=pltpu.MemorySpace.VMEM)] * 4,
        out_specs=pl.BlockSpec(memory_space=pltpu.MemorySpace.VMEM),
    )(kg_inp, w1, w2, adj)


# ============================= fused forward kernel =============================

def _fused_forward_kernel(
    x_ref, fp_ref,
    bb_w_ref, bb_b_ref,
    rgfm_w_ref, rgfm_b_ref,
    gc1_w_ref, gc2_w_ref, bd_adj_ref, pool_ref,
    kg_x_ref,
    wq_ref, wk_ref, wv_ref, bqkv_ref, wo_ref, bo_ref, bias_ref,
    fc_w_ref, fc_b_ref,
    scales_ref,
    o_ref,
):
    f32 = jnp.float32
    bf16 = jnp.bfloat16

    # ---- backbone stand-in: mamba_feature = x_flat @ Wb + bb -> (B, D) ----
    # TODO(synk): pretrained MambaVision-B-1K backbone (AutoModel.from_pretrained)
    # has no Pallas equivalent; replaced by a deterministic linear projection.
    mamba = jnp.dot(x_ref[...].astype(bf16), bb_w_ref[...],
                    preferred_element_type=f32) + bb_b_ref[...]
    bsz = mamba.shape[0]

    # ---- ROIToGCNFeatureMapper: (B, flat_pool) -> (B, N*F) ----
    fast_flat = jnp.dot(fp_ref[...].astype(bf16), rgfm_w_ref[...],
                        preferred_element_type=f32) + rgfm_b_ref[...]
    # Node-major row stacking (row index = n*B + b) via lane-tile-aligned slices:
    # avoids an in-kernel lane-splitting reshape; adj/pool matrices below are built
    # (kron'd) in the wrapper for this ordering.
    nf = gc1_w_ref.shape[0]
    n_nodes = fast_flat.shape[1] // nf
    fast_inp = jnp.concatenate(
        [fast_flat[:, n * nf:(n + 1) * nf] for n in range(n_nodes)], axis=0)  # (N*B, F)

    # ---- fast (RCNN) GCN branch: gc1 -> LeakyReLU -> gc2, batch folded into rows ----
    s1 = jnp.dot(fast_inp.astype(bf16), gc1_w_ref[...], preferred_element_type=f32)
    h1 = jnp.dot(bd_adj_ref[...], s1, preferred_element_type=f32)     # kron(adj, I_B) @ s1
    h1 = jnp.where(h1 > 0, h1, LRELU_SLOPE * h1)                       # LeakyReLU(0.2)
    s2 = jnp.dot(h1.astype(bf16), gc2_w_ref[...], preferred_element_type=f32)
    fast_x = jnp.dot(bd_adj_ref[...], s2, preferred_element_type=f32)  # (N*B, D)

    # ---- EnhancedFusionModule: single-head attention over 3 tokens per batch ----
    fast_emb = jnp.dot(pool_ref[...], fast_x, preferred_element_type=f32)   # (B, D) per-batch node mean
    kg_emb = jnp.mean(kg_x_ref[...], axis=0, keepdims=True)                 # (1, D), shared (.expand)
    kg_tok = jnp.broadcast_to(kg_emb, (bsz, kg_emb.shape[1]))               # (B, D)
    # token-major rows: [mamba_0..B, fast_0..B, kg_0..B]  -> (3B, D)
    xcat = jnp.concatenate([mamba, fast_emb, kg_tok], axis=0)
    xcat_b = xcat.astype(bf16)

    bqkv = bqkv_ref[...]                                                    # (3, D)
    q = jnp.dot(xcat_b, wq_ref[...], preferred_element_type=f32) + bqkv[0:1, :]  # 1/sqrt(D) folded in
    k = jnp.dot(xcat_b, wk_ref[...], preferred_element_type=f32) + bqkv[1:2, :]
    v = jnp.dot(xcat_b, wv_ref[...], preferred_element_type=f32) + bqkv[2:3, :]

    # scores = q @ k^T  (+ additive block mask so attention stays within each batch)
    scores = lax.dot_general(q, k, (((1,), (1,)), ((), ())),
                             preferred_element_type=f32) + bias_ref[...]     # (3B, 3B)
    scores = scores - jnp.max(scores, axis=-1, keepdims=True)
    p = jnp.exp(scores)
    p = p * pl.reciprocal(jnp.sum(p, axis=-1, keepdims=True), approx=True)
    attn = jnp.dot(p, v, preferred_element_type=f32)                         # (3B, D)
    attn_out = jnp.dot(attn.astype(bf16), wo_ref[...],
                       preferred_element_type=f32) + bo_ref[...]             # (3B, D)

    fast_scale = scales_ref[0]
    kg_scale = scales_ref[1]
    fused = (mamba
             + fast_scale * attn_out[bsz:2 * bsz, :]       # attn_output[:, 1, :]
             + kg_scale * attn_out[2 * bsz:3 * bsz, :])    # attn_output[:, 2, :]
    # Dropout(0.5) is identity at inference.

    # ---- classifier (lane-padded to 128 cols; sliced to 29 in the wrapper) ----
    o_ref[...] = jnp.dot(fused.astype(bf16), fc_w_ref[...],
                         preferred_element_type=f32) + fc_b_ref[...]


# ================================ model wrapper ================================

def rcnn_mamba_forward(prep, x, fast_pool):
    Bn = x.shape[0]
    x_flat = x.reshape(Bn, -1)            # NCHW row-major flatten == torch .view(B, -1)
    fp_flat = fast_pool.reshape(Bn, -1)

    # NOTE: at the original PyTorch sizes (flat_img=150528, D=1024) the backbone
    # weight would need a K-tiled grid + VMEM accumulator instead of a whole-array
    # block (v7x has only 64 MiB VMEM); at these toy sizes everything fits easily.
    logits_padded = pl.pallas_call(
        _fused_forward_kernel,
        out_shape=jax.ShapeDtypeStruct((Bn, PADDED_CLASSES), jnp.float32),
        in_specs=[pl.BlockSpec(memory_space=pltpu.MemorySpace.VMEM)] * 20
                 + [pl.BlockSpec(memory_space=pltpu.MemorySpace.SMEM)],
        out_specs=pl.BlockSpec(memory_space=pltpu.MemorySpace.VMEM),
    )(x_flat, fp_flat,
      prep["backbone_w"], prep["backbone_b"],
      prep["rgfm_w"], prep["rgfm_b"],
      prep["gc1_w"], prep["gc2_w"], prep["bd_adj"], prep["pool"],
      prep["kg_x"],
      prep["attn_wq"], prep["attn_wk"], prep["attn_wv"], prep["attn_bqkv"],
      prep["attn_wo"], prep["attn_bo"], prep["attn_bias"],
      prep["fc_w"], prep["fc_b"],
      prep["scales"])
    return logits_padded[:, :NUM_CLASSES]


# ============================= deterministic params ============================

def init_params(key):
    D = EMBED_DIM
    ks = list(jax.random.split(key, 24))
    it = iter(ks)

    def u(shape, fan_in):
        s = 1.0 / math.sqrt(fan_in)
        return jax.random.uniform(next(it), shape, jnp.float32, -s, s)

    p = {}
    # backbone stand-in
    flat_img = IMG_C * IMG_HW * IMG_HW
    p["backbone_w"] = u((flat_img, D), flat_img)
    p["backbone_b"] = u((1, D), flat_img)
    # ROIToGCNFeatureMapper fc
    flat_pool = POOL_C * POOL_HW * POOL_HW
    p["rgfm_w"] = u((flat_pool, NUM_NODES * NODE_FEAT), flat_pool)
    p["rgfm_b"] = u((1, NUM_NODES * NODE_FEAT), flat_pool)
    # GraphConvolution weights (uniform(-1/sqrt(out), 1/sqrt(out)) like reset_parameters)
    p["gc1_w"] = u((NODE_FEAT, D), D)
    p["gc2_w"] = u((D, D), D)
    p["kg_gc1_w"] = u((KG_FEAT, D), D)
    p["kg_gc2_w"] = u((D, D), D)
    # graph data (stand-ins for the pickle-loaded adjacencies / entity embeddings)
    adj_r = jax.random.uniform(next(it), (NUM_NODES, NUM_NODES), jnp.float32)
    p["adj_rcnn"] = adj_r / jnp.sum(adj_r, axis=-1, keepdims=True)
    adj_k = jax.random.uniform(next(it), (N_KG, N_KG), jnp.float32)
    p["adj_kg"] = adj_k / jnp.sum(adj_k, axis=-1, keepdims=True)
    p["kg_inp"] = jax.random.normal(next(it), (N_KG, KG_FEAT), jnp.float32)
    # MultiheadAttention (num_heads=1).  NOTE: torch stores in_proj_weight as
    # (3D, D) applied as x @ W^T plus a (3D,) bias; here the weights are already
    # split and pre-transposed to (in, out) with a (3, D) bias.
    p["attn_wq"] = u((D, D), D)
    p["attn_wk"] = u((D, D), D)
    p["attn_wv"] = u((D, D), D)
    p["attn_bqkv"] = jnp.zeros((3, D), jnp.float32)
    p["attn_wo"] = u((D, D), D)
    p["attn_bo"] = u((1, D), D)
    # fast_scale / kg_scale parameters (module inits both to 0.0)
    p["scales"] = jnp.zeros((2,), jnp.float32)
    # final fc
    p["fc_w"] = u((D, NUM_CLASSES), D)
    p["fc_b"] = u((1, NUM_CLASSES), D)
    return p


def prepare_inference_params(p):
    """One-time parameter prep: bf16 weight cast, kron'd adjacency/pooling for the
    batch-folded GCN, hoisted KG branch, folded softmax scale, padded classifier."""
    D = EMBED_DIM
    bf16 = jnp.bfloat16
    eye_b = jnp.eye(B, dtype=jnp.float32)

    prep = {}
    prep["backbone_w"] = p["backbone_w"].astype(bf16)
    prep["backbone_b"] = p["backbone_b"]
    prep["rgfm_w"] = p["rgfm_w"].astype(bf16)
    prep["rgfm_b"] = p["rgfm_b"]
    prep["gc1_w"] = p["gc1_w"].astype(bf16)
    prep["gc2_w"] = p["gc2_w"].astype(bf16)
    # node-major (row = n*B + b) batch-folded adjacency and node-mean pooling matrix
    prep["bd_adj"] = jnp.kron(p["adj_rcnn"], eye_b)                               # (N*B, N*B)
    prep["pool"] = jnp.kron(jnp.full((1, NUM_NODES), 1.0 / NUM_NODES, jnp.float32),
                            eye_b)                                                # (B, N*B)
    # KG branch is parameter-only -> hoisted out of the per-inference path
    prep["kg_x"] = precompute_kg_x(p["kg_inp"], p["kg_gc1_w"], p["kg_gc2_w"], p["adj_kg"])
    # fold 1/sqrt(D) softmax scaling into the Q projection (weight AND bias row)
    scale = 1.0 / math.sqrt(D)
    prep["attn_wq"] = (p["attn_wq"] * scale).astype(bf16)
    prep["attn_wk"] = p["attn_wk"].astype(bf16)
    prep["attn_wv"] = p["attn_wv"].astype(bf16)
    prep["attn_bqkv"] = jnp.concatenate([p["attn_bqkv"][0:1] * scale,
                                         p["attn_bqkv"][1:3]], axis=0)
    prep["attn_wo"] = p["attn_wo"].astype(bf16)
    prep["attn_bo"] = p["attn_bo"]
    # additive mask: tokens attend only within their own batch element
    bid = jnp.arange(3 * B) % B
    allowed = bid[:, None] == bid[None, :]
    prep["attn_bias"] = jnp.where(allowed, 0.0, -1e30).astype(jnp.float32)        # (3B, 3B)
    # lane-dense classifier: zero-pad 29 -> 128 output columns
    fc_w = jnp.zeros((D, PADDED_CLASSES), jnp.float32).at[:, :NUM_CLASSES].set(p["fc_w"])
    fc_b = jnp.zeros((1, PADDED_CLASSES), jnp.float32).at[:, :NUM_CLASSES].set(p["fc_b"])
    prep["fc_w"] = fc_w.astype(bf16)
    prep["fc_b"] = fc_b
    prep["scales"] = p["scales"].reshape(-1)                                      # (2,) SMEM
    return prep


# ==================================== main =====================================

if __name__ == "__main__":
    key = jax.random.PRNGKey(0)
    kx, kf, kp = jax.random.split(key, 3)
    x = jax.random.normal(kx, (B, IMG_C, IMG_HW, IMG_HW), jnp.float32)
    fast_pool = jax.random.normal(kf, (B, POOL_C, POOL_HW, POOL_HW), jnp.float32)

    params = init_params(kp)
    prep = prepare_inference_params(params)   # once per parameter set

    out = jax.jit(rcnn_mamba_forward)(prep, x, fast_pool)
    out = jax.block_until_ready(out)
    assert out.shape == (B, NUM_CLASSES) and out.dtype == jnp.float32
    assert bool(jnp.all(jnp.isfinite(out)))
    print("KERNEL_OK")
</pallas_src>

<mosaic_0001>
module attributes {stable_mosaic.version = 11 : i64} {
  func.func @_kg_branch_kernel(%arg0: memref<8x128xf32, #tpu.memory_space<vmem>>, %arg1: memref<128x128xf32, #tpu.memory_space<vmem>>, %arg2: memref<128x128xf32, #tpu.memory_space<vmem>>, %arg3: memref<8x8xf32, #tpu.memory_space<vmem>>, %arg4: memref<8x128xf32, #tpu.memory_space<vmem>>) attributes {dimension_semantics = [], scalar_prefetch = 0 : i64, scratch_operands = 0 : i64, tpu.core_type = #tpu.core_type<tc>} {
    %c0 = arith.constant 0 : index
    %c0_0 = arith.constant 0 : index
    %0 = vector.load %arg0[%c0, %c0_0] : memref<8x128xf32, #tpu.memory_space<vmem>>, vector<8x128xf32>
    %c0_1 = arith.constant 0 : index
    %c0_2 = arith.constant 0 : index
    %1 = vector.load %arg1[%c0_1, %c0_2] : memref<128x128xf32, #tpu.memory_space<vmem>>, vector<128x128xf32>
    %cst = arith.constant dense<0.000000e+00> : vector<8x128xf32>
    %2 = tpu.matmul %0, %1, %cst {dimension_numbers = #tpu.dot_dimension_numbers<[1], [0], [0], [1], [0, 0, 1, 1], [], []>} : vector<8x128xf32>, vector<128x128xf32>, vector<8x128xf32> -> vector<8x128xf32>
    %c0_3 = arith.constant 0 : index
    %c0_4 = arith.constant 0 : index
    %3 = vector.load %arg3[%c0_3, %c0_4] : memref<8x8xf32, #tpu.memory_space<vmem>>, vector<8x8xf32>
    %cst_5 = arith.constant dense<0.000000e+00> : vector<8x128xf32>
    %4 = tpu.matmul %3, %2, %cst_5 {dimension_numbers = #tpu.dot_dimension_numbers<[1], [0], [0], [1], [0, 0, 1, 1], [], []>} : vector<8x8xf32>, vector<8x128xf32>, vector<8x128xf32> -> vector<8x128xf32>
    %cst_6 = arith.constant 0.000000e+00 : f32
    %5 = vector.broadcast %cst_6 : f32 to vector<8x128xf32>
    %6 = arith.cmpf ogt, %4, %5 : vector<8x128xf32>
    %cst_7 = arith.constant 2.000000e-01 : f32
    %7 = vector.broadcast %cst_7 : f32 to vector<8x128xf32>
    %8 = arith.mulf %7, %4 : vector<8x128xf32>
    %9 = arith.select %6, %4, %8 : vector<8x128xi1>, vector<8x128xf32>
    %c0_8 = arith.constant 0 : index
    %c0_9 = arith.constant 0 : index
    %10 = vector.load %arg2[%c0_8, %c0_9] : memref<128x128xf32, #tpu.memory_space<vmem>>, vector<128x128xf32>
    %cst_10 = arith.constant dense<0.000000e+00> : vector<8x128xf32>
    %11 = tpu.matmul %9, %10, %cst_10 {dimension_numbers = #tpu.dot_dimension_numbers<[1], [0], [0], [1], [0, 0, 1, 1], [], []>} : vector<8x128xf32>, vector<128x128xf32>, vector<8x128xf32> -> vector<8x128xf32>
    %c0_11 = arith.constant 0 : index
    %c0_12 = arith.constant 0 : index
    %12 = vector.load %arg3[%c0_11, %c0_12] : memref<8x8xf32, #tpu.memory_space<vmem>>, vector<8x8xf32>
    %cst_13 = arith.constant dense<0.000000e+00> : vector<8x128xf32>
    %13 = tpu.matmul %12, %11, %cst_13 {dimension_numbers = #tpu.dot_dimension_numbers<[1], [0], [0], [1], [0, 0, 1, 1], [], []>} : vector<8x8xf32>, vector<8x128xf32>, vector<8x128xf32> -> vector<8x128xf32>
    %c0_14 = arith.constant 0 : index
    %c0_15 = arith.constant 0 : index
    %14 = vector.load %arg4[%c0_14, %c0_15] : memref<8x128xf32, #tpu.memory_space<vmem>>, vector<8x128xf32>
    tpu.vector_store %arg4[%c0_14, %c0_15], %13 {strides = array<i32>} : memref<8x128xf32, #tpu.memory_space<vmem>>, vector<8x128xf32>,
    return
  }
}

</mosaic_0001>

<llo_original>
// kernel: tpu_custom_call.1
$region0: #{tpu_custom_call.1}
  #allocation0 [shape = 'u32[]', space=smem, size = 0x4, offset = 0x4, fixed_abs, tag = 'smem constant byte address 0x4 - core index']
  #allocation1 [shape = 'u32[144,128]{1,0:T(1,128)}', space=vmem, size = 0x12000, scoped, tag = 'internal scratch']
  %s0 = inlined_call_operand.hbm [shape: f32[8,128], index: 0, kind: input, shape index: {}]
  %s1 = inlined_call_operand.hbm [shape: f32[128,128], index: 1, kind: input, shape index: {}]
  %s2 = inlined_call_operand.hbm [shape: f32[128,128], index: 2, kind: input, shape index: {}]
  %s3 = inlined_call_operand.vmem [shape: f32[8,8], index: 3, kind: input, shape index: {}]
  %s4 = inlined_call_operand.hbm [shape: f32[8,128], index: 4, kind: output, shape index: {}]
  %s5 = sld [smem:[#allocation0]]
  $region38: #{tpu_custom_call.1} parent=0
    _
  %s7 = ssub.s32 1, %s5
  %s8 = scalar_select 0, %s7, %s5
  $region1: #{tpu_custom_call.1} parent=0
    #allocation2 [shape = 'u8[4096]{0}', space=vmem, size = 0x1000, scoped, tag = 'input window, operand 0, single buffered']
    #allocation3 [shape = 's32[1]{0}', space=sflag, size = 0x4, scoped, tag = 'scoped memory for tpu_custom_call.1']
    #allocation4 [shape = 's32[1]{0}', space=sflag, size = 0x4, scoped, tag = 'scoped memory for tpu_custom_call.1']
    #allocation5 [shape = 'u8[65536]{0}', space=vmem, size = 0x10000, scoped, tag = 'input window, operand 1, single buffered']
    #allocation6 [shape = 's32[1]{0}', space=sflag, size = 0x4, scoped, tag = 'scoped memory for tpu_custom_call.1']
    #allocation7 [shape = 'u8[65536]{0}', space=vmem, size = 0x10000, scoped, tag = 'input window, operand 2, single buffered']
    #allocation8 [shape = 'u8[4096]{0}', space=vmem, size = 0x1000, scoped, tag = 'output window, operand 0, single buffered']
    %9 = vsyncpa [#allocation3], 0
    %10 = vsyncpa [#allocation6], 0
    %11 = vsyncpa [#allocation4], 0
    // Predicated region
    $region2: #{tpu_custom_call.1} parent=1 // pred_check
      _
    $region3: #{tpu_custom_call.1} parent=1 // pred_check_branch
      %13 = sbr.rel (0) target = $region5
    $region4: #{tpu_custom_call.1} parent=1 // pred_region
      %s15 = ssub.s32 128, 128
      %16 = vsyncadd [#allocation3], %s15
      %s18 = sshll.u32 [#allocation2], 4
      %s19 = int_to_ptr.vmem [resolvable:$true] %s18
      %21 = dma.hbm_to_vmem [thread:$0]  %s0, 128, %s19, [#allocation3]
    $region5: #{tpu_custom_call.1} parent=1 // pred_fallthru
      _
    // Predicated region
    $region6: #{tpu_custom_call.1} parent=1 // pred_check
      _
    $region7: #{tpu_custom_call.1} parent=1 // pred_check_branch
      %23 = sbr.rel (0) target = $region9
    $region8: #{tpu_custom_call.1} parent=1 // pred_region
      %s25 = ssub.s32 2048, 2048
      %26 = vsyncadd [#allocation6], %s25
      %s27 = sshll.u32 [#allocation5], 4
      %s28 = int_to_ptr.vmem [resolvable:$true] %s27
      %33 = dma.hbm_to_vmem [thread:$0]  %s1, 2048, %s28, [#allocation6], 128, 128, 8
    $region9: #{tpu_custom_call.1} parent=1 // pred_fallthru
      _
    // Predicated region
    $region10: #{tpu_custom_call.1} parent=1 // pred_check
      _
    $region11: #{tpu_custom_call.1} parent=1 // pred_check_branch
      %35 = sbr.rel (0) target = $region13
    $region12: #{tpu_custom_call.1} parent=1 // pred_region
      %s37 = ssub.s32 2048, 2048
      %38 = vsyncadd [#allocation6], %s37
      %s39 = sshll.u32 [#allocation7], 4
      %s40 = int_to_ptr.vmem [resolvable:$true] %s39
      %45 = dma.hbm_to_vmem [thread:$0]  %s2, 2048, %s40, [#allocation6], 128, 128, 8
    $region13: #{tpu_custom_call.1} parent=1 // pred_fallthru
      _
    // Predicated region
    $region14: #{tpu_custom_call.1} parent=1 // pred_check
      _
    $region15: #{tpu_custom_call.1} parent=1 // pred_check_branch
      %47 = sbr.rel (0) target = $region17
    $region16: #{tpu_custom_call.1} parent=1 // pred_region
      _
    $region17: #{tpu_custom_call.1} parent=1 // pred_fallthru
      _
    // Predicated region
    $region18: #{tpu_custom_call.1} parent=1 // pred_check
      _
    $region19: #{tpu_custom_call.1} parent=1 // pred_check_branch
      %49 = sbr.rel (0) target = $region21
    $region20: #{tpu_custom_call.1} parent=1 // pred_region
      %50 = dma.done [#allocation3], 128
    $region21: #{tpu_custom_call.1} parent=1 // pred_fallthru
      _
    // Predicated region
    $region22: #{tpu_custom_call.1} parent=1 // pred_check
      _
    $region23: #{tpu_custom_call.1} parent=1 // pred_check_branch
      %52 = sbr.rel (0) target = $region25
    $region24: #{tpu_custom_call.1} parent=1 // pred_region
      %53 = dma.done [#allocation6], 2048
    $region25: #{tpu_custom_call.1} parent=1 // pred_fallthru
      _
    // Predicated region
    $region26: #{tpu_custom_call.1} parent=1 // pred_check
      _
    $region27: #{tpu_custom_call.1} parent=1 // pred_check_branch
      %55 = sbr.rel (0) target = $region29
    $region28: #{tpu_custom_call.1} parent=1 // pred_region
      %56 = dma.done [#allocation6], 2048
    $region29: #{tpu_custom_call.1} parent=1 // pred_fallthru
      _
    %v57 = vld [vmem:[#allocation2] sm:$0xff]
    %v58 = vld [vmem:[#allocation5] sm:$0xff]
    %v59 = vld [vmem:[#allocation5 + $0x8] sm:$0xff]
    %v60 = vld [vmem:[#allocation5 + $0x10] sm:$0xff]
    %v61 = vld [vmem:[#allocation5 + $0x18] sm:$0xff]
    %v62 = vld [vmem:[#allocation5 + $0x20] sm:$0xff]
    %v63 = vld [vmem:[#allocation5 + $0x28] sm:$0xff]
    %v64 = vld [vmem:[#allocation5 + $0x30] sm:$0xff]
    %v65 = vld [vmem:[#allocation5 + $0x38] sm:$0xff]
    %v66 = vld [vmem:[#allocation5 + $0x40] sm:$0xff]
    %v67 = vld [vmem:[#allocation5 + $0x48] sm:$0xff]
    %v68 = vld [vmem:[#allocation5 + $0x50] sm:$0xff]
    %v69 = vld [vmem:[#allocation5 + $0x58] sm:$0xff]
    %v70 = vld [vmem:[#allocation5 + $0x60] sm:$0xff]
    %v71 = vld [vmem:[#allocation5 + $0x68] sm:$0xff]
    %v72 = vld [vmem:[#allocation5 + $0x70] sm:$0xff]
    %v73 = vld [vmem:[#allocation5 + $0x78] sm:$0xff]
    %74 = vmatprep.subr.mxu0 0.0
    %75 = vmatpush1.msra.mxu0 %v58
    %76 = vmatprep.subr.mxu0 0.0
    %77 = vmatpush1.msra.mxu0 %v59
    %78 = vmatprep.subr.mxu0 0.0
    %79 = vmatpush1.msra.mxu0 %v60
    %80 = vmatprep.subr.mxu0 0.0
    %81 = vmatpush1.msra.mxu0 %v61
    %82 = vmatprep.subr.mxu0 0.0
    %83 = vmatpush1.msra.mxu0 %v62
    %84 = vmatprep.subr.mxu0 0.0
    %85 = vmatpush1.msra.mxu0 %v63
    %86 = vmatprep.subr.mxu0 0.0
    %87 = vmatpush1.msra.mxu0 %v64
    %88 = vmatprep.subr.mxu0 0.0
    %89 = vmatpush1.msra.mxu0 %v65
    %90 = vmatprep.subr.mxu0 0.0
    %91 = vmatpush1.msra.mxu0 %v66
    %92 = vmatprep.subr.mxu0 0.0
    %93 = vmatpush1.msra.mxu0 %v67
    %94 = vmatprep.subr.mxu0 0.0
    %95 = vmatpush1.msra.mxu0 %v68
    %96 = vmatprep.subr.mxu0 0.0
    %97 = vmatpush1.msra.mxu0 %v69
    %98 = vmatprep.subr.mxu0 0.0
    %99 = vmatpush1.msra.mxu0 %v70
    %100 = vmatprep.subr.mxu0 0.0
    %101 = vmatpush1.msra.mxu0 %v71
    %102 = vmatprep.subr.mxu0 0.0
    %103 = vmatpush1.msra.mxu0 %v72
    %104 = vmatprep.subr.mxu0 0.0
    %105 = vmatpush1.msra.mxu0 %v73
    %106 = vmatprep.subr.mxu0 0.0
    %107 = vmatpush1.msra.mxu0 0.0
    %108 = vmatprep.subr.mxu0 0.0
    %109 = vmatpush1.msra.mxu0 0.0
    %110 = vmatprep.subr.mxu0 0.0
    %111 = vmatpush1.msra.mxu0 0.0
    %112 = vmatprep.subr.mxu0 0.0
    %113 = vmatpush1.msra.mxu0 0.0
    %114 = vmatprep.subr.mxu0 0.0
    %115 = vmatpush1.msra.mxu0 0.0
    %116 = vmatprep.subr.mxu0 0.0
    %117 = vmatpush1.msra.mxu0 0.0
    %118 = vmatprep.subr.mxu0 0.0
    %119 = vmatpush1.msra.mxu0 0.0
    %120 = vmatprep.subr.mxu0 0.0
    %121 = vmatpush1.msra.mxu0 0.0
    %122 = vmatprep.subr.mxu0 0.0
    %123 = vmatpush1.msra.mxu0 0.0
    %124 = vmatprep.subr.mxu0 0.0
    %125 = vmatpush1.msra.mxu0 0.0
    %126 = vmatprep.subr.mxu0 0.0
    %127 = vmatpush1.msra.mxu0 0.0
    %128 = vmatprep.subr.mxu0 0.0
    %129 = vmatpush1.msra.mxu0 0.0
    %130 = vmatprep.subr.mxu0 0.0
    %131 = vmatpush1.msra.mxu0 0.0
    %132 = vmatprep.subr.mxu0 0.0
    %133 = vmatpush1.msra.mxu0 0.0
    %134 = vmatprep.subr.mxu0 0.0
    %135 = vmatpush1.msra.mxu0 0.0
    %136 = vmatprep.subr.mxu0 0.0
    %137 = vmatpush1.msra.mxu0 0.0
    %138 = vmatprep.mubr.f32.mxu0 0.0
    %139 = vmatmul.mubr.f32.gmra.mrb[0].mxu0 %v57
    %v140 = vpop.f32.mrb[0].mxu0
    %v141 = vadd.f32 0.0, %v140
    %v142 = vpop.f32.mrb[0].mxu0
    %143 = vdwg.mxu0
    %v144 = vld [vmem:[%s3] sm:$0xff]
    %vm145 = vcmask 64512
    %v147 = vsel %vm145, %v144, 0
    %149 = vmatprep.subr.mxu0 0.0
    %150 = vmatpush1.msra.mxu0 %v141
    %151 = vmatprep.subr.mxu0 0.0
    %152 = vmatpush1.msra.mxu0 0.0
    %153 = vmatprep.subr.mxu0 0.0
    %154 = vmatpush1.msra.mxu0 0.0
    %155 = vmatprep.subr.mxu0 0.0
    %156 = vmatpush1.msra.mxu0 0.0
    %157 = vmatprep.subr.mxu0 0.0
    %158 = vmatpush1.msra.mxu0 0.0
    %159 = vmatprep.subr.mxu0 0.0
    %160 = vmatpush1.msra.mxu0 0.0
    %161 = vmatprep.subr.mxu0 0.0
    %162 = vmatpush1.msra.mxu0 0.0
    %163 = vmatprep.subr.mxu0 0.0
    %164 = vmatpush1.msra.mxu0 0.0
    %165 = vmatprep.subr.mxu0 0.0
    %166 = vmatpush1.msra.mxu0 0.0
    %167 = vmatprep.subr.mxu0 0.0
    %168 = vmatpush1.msra.mxu0 0.0
    %169 = vmatprep.subr.mxu0 0.0
    %170 = vmatpush1.msra.mxu0 0.0
    %171 = vmatprep.subr.mxu0 0.0
    %172 = vmatpush1.msra.mxu0 0.0
    %173 = vmatprep.subr.mxu0 0.0
    %174 = vmatpush1.msra.mxu0 0.0
    %175 = vmatprep.subr.mxu0 0.0
    %176 = vmatpush1.msra.mxu0 0.0
    %177 = vmatprep.subr.mxu0 0.0
    %178 = vmatpush1.msra.mxu0 0.0
    %179 = vmatprep.subr.mxu0 0.0
    %180 = vmatpush1.msra.mxu0 0.0
    %181 = vmatprep.subr.mxu0 0.0
    %182 = vmatpush1.msra.mxu0 0.0
    %183 = vmatprep.subr.mxu0 0.0
    %184 = vmatpush1.msra.mxu0 0.0
    %185 = vmatprep.subr.mxu0 0.0
    %186 = vmatpush1.msra.mxu0 0.0
    %187 = vmatprep.subr.mxu0 0.0
    %188 = vmatpush1.msra.mxu0 0.0
    %189 = vmatprep.subr.mxu0 0.0
    %190 = vmatpush1.msra.mxu0 0.0
    %191 = vmatprep.subr.mxu0 0.0
    %192 = vmatpush1.msra.mxu0 0.0
    %193 = vmatprep.subr.mxu0 0.0
    %194 = vmatpush1.msra.mxu0 0.0
    %195 = vmatprep.subr.mxu0 0.0
    %196 = vmatpush1.msra.mxu0 0.0
    %197 = vmatprep.subr.mxu0 0.0
    %198 = vmatpush1.msra.mxu0 0.0
    %199 = vmatprep.subr.mxu0 0.0
    %200 = vmatpush1.msra.mxu0 0.0
    %201 = vmatprep.subr.mxu0 0.0
    %202 = vmatpush1.msra.mxu0 0.0
    %203 = vmatprep.subr.mxu0 0.0
    %204 = vmatpush1.msra.mxu0 0.0
    %205 = vmatprep.subr.mxu0 0.0
    %206 = vmatpush1.msra.mxu0 0.0
    %207 = vmatprep.subr.mxu0 0.0
    %208 = vmatpush1.msra.mxu0 0.0
    %209 = vmatprep.subr.mxu0 0.0
    %210 = vmatpush1.msra.mxu0 0.0
    %211 = vmatprep.subr.mxu0 0.0
    %212 = vmatpush1.msra.mxu0 0.0
    %213 = vmatprep.mubr.f32.mxu0 0.0
    %214 = vmatmul.mubr.f32.gmra.mrb[0].mxu0 %v147
    %v215 = vpop.f32.mrb[0].mxu0
    %v216 = vadd.f32 0.0, %v215
    %v217 = vpop.f32.mrb[0].mxu0
    %218 = vdwg.mxu0
    %vm219 = vcmp.gt.f32.partialorder %v216, 0.0
    %v220 = vmul.f32 %v216, 0.2
    %v221 = vsel %vm219, %v216, %v220
    %v222 = vld [vmem:[#allocation7] sm:$0xff]
    %v223 = vld [vmem:[#allocation7 + $0x8] sm:$0xff]
    %v224 = vld [vmem:[#allocation7 + $0x10] sm:$0xff]
    %v225 = vld [vmem:[#allocation7 + $0x18] sm:$0xff]
    %v226 = vld [vmem:[#allocation7 + $0x20] sm:$0xff]
    %v227 = vld [vmem:[#allocation7 + $0x28] sm:$0xff]
    %v228 = vld [vmem:[#allocation7 + $0x30] sm:$0xff]
    %v229 = vld [vmem:[#allocation7 + $0x38] sm:$0xff]
    %v230 = vld [vmem:[#allocation7 + $0x40] sm:$0xff]
    %v231 = vld [vmem:[#allocation7 + $0x48] sm:$0xff]
    %v232 = vld [vmem:[#allocation7 + $0x50] sm:$0xff]
    %v233 = vld [vmem:[#allocation7 + $0x58] sm:$0xff]
    %v234 = vld [vmem:[#allocation7 + $0x60] sm:$0xff]
    %v235 = vld [vmem:[#allocation7 + $0x68] sm:$0xff]
    %v236 = vld [vmem:[#allocation7 + $0x70] sm:$0xff]
    %v237 = vld [vmem:[#allocation7 + $0x78] sm:$0xff]
    %238 = vmatprep.subr.mxu0 0.0
    %239 = vmatpush1.msra.mxu0 %v222
    %240 = vmatprep.subr.mxu0 0.0
    %241 = vmatpush1.msra.mxu0 %v223
    %242 = vmatprep.subr.mxu0 0.0
    %243 = vmatpush1.msra.mxu0 %v224
    %244 = vmatprep.subr.mxu0 0.0
    %245 = vmatpush1.msra.mxu0 %v225
    %246 = vmatprep.subr.mxu0 0.0
    %247 = vmatpush1.msra.mxu0 %v226
    %248 = vmatprep.subr.mxu0 0.0
    %249 = vmatpush1.msra.mxu0 %v227
    %250 = vmatprep.subr.mxu0 0.0
    %251 = vmatpush1.msra.mxu0 %v228
    %252 = vmatprep.subr.mxu0 0.0
    %253 = vmatpush1.msra.mxu0 %v229
    %254 = vmatprep.subr.mxu0 0.0
    %255 = vmatpush1.msra.mxu0 %v230
    %256 = vmatprep.subr.mxu0 0.0
    %257 = vmatpush1.msra.mxu0 %v231
    %258 = vmatprep.subr.mxu0 0.0
    %259 = vmatpush1.msra.mxu0 %v232
    %260 = vmatprep.subr.mxu0 0.0
    %261 = vmatpush1.msra.mxu0 %v233
    %262 = vmatprep.subr.mxu0 0.0
    %263 = vmatpush1.msra.mxu0 %v234
    %264 = vmatprep.subr.mxu0 0.0
    %265 = vmatpush1.msra.mxu0 %v235
    %266 = vmatprep.subr.mxu0 0.0
    %267 = vmatpush1.msra.mxu0 %v236
    %268 = vmatprep.subr.mxu0 0.0
    %269 = vmatpush1.msra.mxu0 %v237
    %270 = vmatprep.subr.mxu0 0.0
    %271 = vmatpush1.msra.mxu0 0.0
    %272 = vmatprep.subr.mxu0 0.0
    %273 = vmatpush1.msra.mxu0 0.0
    %274 = vmatprep.subr.mxu0 0.0
    %275 = vmatpush1.msra.mxu0 0.0
    %276 = vmatprep.subr.mxu0 0.0
    %277 = vmatpush1.msra.mxu0 0.0
    %278 = vmatprep.subr.mxu0 0.0
    %279 = vmatpush1.msra.mxu0 0.0
    %280 = vmatprep.subr.mxu0 0.0
    %281 = vmatpush1.msra.mxu0 0.0
    %282 = vmatprep.subr.mxu0 0.0
    %283 = vmatpush1.msra.mxu0 0.0
    %284 = vmatprep.subr.mxu0 0.0
    %285 = vmatpush1.msra.mxu0 0.0
    %286 = vmatprep.subr.mxu0 0.0
    %287 = vmatpush1.msra.mxu0 0.0
    %288 = vmatprep.subr.mxu0 0.0
    %289 = vmatpush1.msra.mxu0 0.0
    %290 = vmatprep.subr.mxu0 0.0
    %291 = vmatpush1.msra.mxu0 0.0
    %292 = vmatprep.subr.mxu0 0.0
    %293 = vmatpush1.msra.mxu0 0.0
    %294 = vmatprep.subr.mxu0 0.0
    %295 = vmatpush1.msra.mxu0 0.0
    %296 = vmatprep.subr.mxu0 0.0
    %297 = vmatpush1.msra.mxu0 0.0
    %298 = vmatprep.subr.mxu0 0.0
    %299 = vmatpush1.msra.mxu0 0.0
    %300 = vmatprep.subr.mxu0 0.0
    %301 = vmatpush1.msra.mxu0 0.0
    %302 = vmatprep.mubr.f32.mxu0 0.0
    %303 = vmatmul.mubr.f32.gmra.mrb[0].mxu0 %v221
    %v304 = vpop.f32.mrb[0].mxu0
    %v305 = vadd.f32 0.0, %v304
    %v306 = vpop.f32.mrb[0].mxu0
    %307 = vdwg.mxu0
    %308 = vmatprep.subr.mxu0 0.0
    %309 = vmatpush1.msra.mxu0 %v305
    %310 = vmatprep.subr.mxu0 0.0
    %311 = vmatpush1.msra.mxu0 0.0
    %312 = vmatprep.subr.mxu0 0.0
    %313 = vmatpush1.msra.mxu0 0.0
    %314 = vmatprep.subr.mxu0 0.0
    %315 = vmatpush1.msra.mxu0 0.0
    %316 = vmatprep.subr.mxu0 0.0
    %317 = vmatpush1.msra.mxu0 0.0
    %318 = vmatprep.subr.mxu0 0.0
    %319 = vmatpush1.msra.mxu0 0.0
    %320 = vmatprep.subr.mxu0 0.0
    %321 = vmatpush1.msra.mxu0 0.0
    %322 = vmatprep.subr.mxu0 0.0
    %323 = vmatpush1.msra.mxu0 0.0
    %324 = vmatprep.subr.mxu0 0.0
    %325 = vmatpush1.msra.mxu0 0.0
    %326 = vmatprep.subr.mxu0 0.0
    %327 = vmatpush1.msra.mxu0 0.0
    %328 = vmatprep.subr.mxu0 0.0
    %329 = vmatpush1.msra.mxu0 0.0
    %330 = vmatprep.subr.mxu0 0.0
    %331 = vmatpush1.msra.mxu0 0.0
    %332 = vmatprep.subr.mxu0 0.0
    %333 = vmatpush1.msra.mxu0 0.0
    %334 = vmatprep.subr.mxu0 0.0
    %335 = vmatpush1.msra.mxu0 0.0
    %336 = vmatprep.subr.mxu0 0.0
    %337 = vmatpush1.msra.mxu0 0.0
    %338 = vmatprep.subr.mxu0 0.0
    %339 = vmatpush1.msra.mxu0 0.0
    %340 = vmatprep.subr.mxu0 0.0
    %341 = vmatpush1.msra.mxu0 0.0
    %342 = vmatprep.subr.mxu0 0.0
    %343 = vmatpush1.msra.mxu0 0.0
    %344 = vmatprep.subr.mxu0 0.0
    %345 = vmatpush1.msra.mxu0 0.0
    %346 = vmatprep.subr.mxu0 0.0
    %347 = vmatpush1.msra.mxu0 0.0
    %348 = vmatprep.subr.mxu0 0.0
    %349 = vmatpush1.msra.mxu0 0.0
    %350 = vmatprep.subr.mxu0 0.0
    %351 = vmatpush1.msra.mxu0 0.0
    %352 = vmatprep.subr.mxu0 0.0
    %353 = vmatpush1.msra.mxu0 0.0
    %354 = vmatprep.subr.mxu0 0.0
    %355 = vmatpush1.msra.mxu0 0.0
    %356 = vmatprep.subr.mxu0 0.0
    %357 = vmatpush1.msra.mxu0 0.0
    %358 = vmatprep.subr.mxu0 0.0
    %359 = vmatpush1.msra.mxu0 0.0
    %360 = vmatprep.subr.mxu0 0.0
    %361 = vmatpush1.msra.mxu0 0.0
    %362 = vmatprep.subr.mxu0 0.0
    %363 = vmatpush1.msra.mxu0 0.0
    %364 = vmatprep.subr.mxu0 0.0
    %365 = vmatpush1.msra.mxu0 0.0
    %366 = vmatprep.subr.mxu0 0.0
    %367 = vmatpush1.msra.mxu0 0.0
    %368 = vmatprep.subr.mxu0 0.0
    %369 = vmatpush1.msra.mxu0 0.0
    %370 = vmatprep.subr.mxu0 0.0
    %371 = vmatpush1.msra.mxu0 0.0
    %372 = vmatprep.mubr.f32.mxu0 0.0
    %373 = vmatmul.mubr.f32.gmra.mrb[0].mxu0 %v147
    %v374 = vpop.f32.mrb[0].mxu0
    %v375 = vadd.f32 0.0, %v374
    %v376 = vpop.f32.mrb[0].mxu0
    %377 = vdwg.mxu0
    %378 = vst [vmem:[#allocation8] sm:$0xff] %v375
    // Predicated region
    $region30: #{tpu_custom_call.1} parent=1 // pred_check
      _
    $region31: #{tpu_custom_call.1} parent=1 // pred_check_branch
      %380 = sbr.rel (0) target = $region33
    $region32: #{tpu_custom_call.1} parent=1 // pred_region
      %s382 = ssub.s32 128, 128
      %383 = vsyncadd [#allocation4], %s382
      %s385 = sshll.u32 [#allocation8], 4
      %s386 = int_to_ptr.vmem [resolvable:$true] %s385
      %388 = dma.vmem_to_hbm [thread:$0]  %s386, 128, %s4, [#allocation4]
    $region33: #{tpu_custom_call.1} parent=1 // pred_fallthru
      _
    // Predicated region
    $region34: #{tpu_custom_call.1} parent=1 // pred_check
      _
    $region35: #{tpu_custom_call.1} parent=1 // pred_check_branch
      %390 = sbr.rel (0) target = $region37
    $region36: #{tpu_custom_call.1} parent=1 // pred_region
      %391 = dma.done [#allocation4], 128
    $region37: #{tpu_custom_call.1} parent=1 // pred_fallthru
      _
    %392 = vsyncpa [#allocation3], 1
    %393 = vsyncpa [#allocation6], 1
    %394 = vsyncpa [#allocation4], 1

</llo_original>
